<compile_context>
chip_gen: v7x
topology: tpu7x:2x2x1
jax: 0.10.0
libtpu: 0.0.40
codegen_flags: <defaults>
</compile_context>

<pallas_src>
import jax
import jax.numpy as jnp
import numpy as np
from jax import lax
from jax.experimental import pallas as pl
from jax.experimental.pallas import tpu as pltpu


def _round_up(x, m):
    return (x + m - 1) // m * m


def _pick_m_tiling(M, target=2048):
    """Return (padded M, tile size). Tile is 128-aligned and divides padded M."""
    if M < 128:
        return M, M                      # tiny image: single full-extent block
    Mp = _round_up(M, 128)
    if Mp <= target:
        return Mp, Mp
    for tm in range(target, 127, -128):  # largest 128-multiple divisor <= target
        if Mp % tm == 0:
            return Mp, tm
    return Mp, 128                       # unreachable: 128 | Mp


def _stem_kernel(x_ref, w_ref, shift_ref, o_ref):
    # x_ref:     (Kp, TM)  bf16  im2col patches (taps-major, Cin inner)
    # w_ref:     (Cp, Kp)  bf16  conv weights with BN scale folded in
    # shift_ref: (Cp, 1)   f32   folded BatchNorm shift
    # o_ref:     (Cp, TM)  out dtype (bf16 by default) -- NCHW-ordered block
    acc = jnp.dot(w_ref[...], x_ref[...], preferred_element_type=jnp.float32)
    y = acc + shift_ref[...]
    o_ref[...] = jnp.maximum(y, 0.0).astype(o_ref.dtype)


def _fused_conv_bn_relu(x_pack, w_pack, shift, tm, out_dtype):
    """x_pack: (N, Kp, Mp) bf16; w_pack: (Cp, Kp) bf16; shift: (Cp, 1) f32."""
    N, Kp, Mp = x_pack.shape
    Cp = w_pack.shape[0]
    n_m = Mp // tm

    flops = 2 * N * Mp * Kp * Cp
    bytes_accessed = int(
        x_pack.size * x_pack.dtype.itemsize
        + w_pack.size * w_pack.dtype.itemsize
        + shift.size * 4
        + N * Cp * Mp * np.dtype(out_dtype).itemsize)

    return pl.pallas_call(
        _stem_kernel,
        out_shape=jax.ShapeDtypeStruct((N, Cp, Mp), out_dtype),
        grid=(N, n_m),
        in_specs=[
            pl.BlockSpec((None, Kp, tm), lambda n, m: (n, 0, m)),
            pl.BlockSpec((Cp, Kp), lambda n, m: (0, 0)),      # small constants
            pl.BlockSpec((Cp, 1), lambda n, m: (0, 0)),
        ],
        out_specs=pl.BlockSpec((None, Cp, tm), lambda n, m: (n, 0, m)),
        compiler_params=pltpu.CompilerParams(
            dimension_semantics=("parallel", "parallel")),     # megacore on v7x
        cost_estimate=pl.CostEstimate(
            flops=flops, transcendentals=0, bytes_accessed=bytes_accessed),
    )(x_pack, w_pack, shift)


class PallasStem:
    """JAX/Pallas port of `Stem` (conv, no bias -> BatchNorm2d -> ReLU)."""

    def __init__(self, in_c, out_c, fast_downsample=False, *, key,
                 out_dtype=jnp.bfloat16):
        self.in_c = in_c
        self.out_c = out_c
        self.fast_downsample = fast_downsample
        self.out_dtype = out_dtype
        if fast_downsample:
            self.k, self.stride, self.pad = 4, 4, 0
        else:
            self.k, self.stride, self.pad = 3, 2, 1

        k_w, k_g, k_b, k_m, k_v = jax.random.split(key, 5)
        fan_in = self.k * self.k * in_c
        # Conv weight, HWIO layout, bias=False as in the torch module.
        self.w_hwio = jax.random.normal(
            k_w, (self.k, self.k, in_c, out_c), jnp.float32) / jnp.sqrt(fan_in)
        # BatchNorm2d parameters / running statistics (eval-mode semantics).
        # TODO(synk): training-mode BN (per-batch statistics) not implemented;
        # running stats are folded into a per-channel scale/shift.
        self.gamma = jax.random.uniform(k_g, (out_c,), jnp.float32, 0.5, 1.5)
        self.beta = jax.random.normal(k_b, (out_c,), jnp.float32) * 0.1
        self.running_mean = jax.random.normal(k_m, (out_c,), jnp.float32) * 0.1
        self.running_var = jax.random.uniform(k_v, (out_c,), jnp.float32, 0.5, 1.5)
        self.eps = 1e-5

        self._cp = _round_up(out_c, 8)
        self._kp = _round_up(self.k * self.k * in_c, 8)
        self._w_pack, self._shift = self._pack_params()

    # ---- parameter packing --------------------------------------------------
    def _pack_params(self):
        Cout, Cin, k = self.out_c, self.in_c, self.k
        K = k * k * Cin
        scale = self.gamma / jnp.sqrt(self.running_var + self.eps)
        shift = self.beta - self.running_mean * scale
        # Fold BN scale into the conv weights (review): one less VPU mul.
        w = self.w_hwio * scale                              # (kh, kw, Cin, Cout)
        w = jnp.transpose(w, (3, 0, 1, 2)).reshape(Cout, K)  # k = (kh*k+kw)*Cin+c
        w = jnp.pad(w, ((0, self._cp - Cout), (0, self._kp - K)))
        shift = jnp.pad(shift, (0, self._cp - Cout)).reshape(self._cp, 1)
        return w.astype(jnp.bfloat16), shift.astype(jnp.float32)

    # ---- activation packing (wrapper-side 9/16-tap im2col, bf16, NCHW) -------
    def _pack_input(self, x_nchw):
        N, Cin, H, W = x_nchw.shape
        assert Cin == self.in_c
        k, s, p = self.k, self.stride, self.pad
        x = x_nchw.astype(jnp.bfloat16)                      # cast before im2col
        if p:
            x = jnp.pad(x, ((0, 0), (0, 0), (p, p), (p, p)))
        Hp, Wp = x.shape[2], x.shape[3]
        Ho, Wo = (Hp - k) // s + 1, (Wp - k) // s + 1
        taps = []
        for kh in range(k):
            for kw in range(k):
                taps.append(x[:, :, kh::s, kw::s][:, :, :Ho, :Wo])
        x_pack = jnp.stack(taps, axis=1)                     # (N, k*k, Cin, Ho, Wo)
        x_pack = x_pack.reshape(N, k * k * Cin, Ho * Wo)     # (N, K, M)
        return x_pack, Ho, Wo

    # ---- forward --------------------------------------------------------------
    def forward(self, x_nchw):
        x_pack, Ho, Wo = self._pack_input(x_nchw)
        N, K, M = x_pack.shape
        Mp, tm = _pick_m_tiling(M)
        x_pack = jnp.pad(x_pack, ((0, 0), (0, self._kp - K), (0, Mp - M)))
        out = _fused_conv_bn_relu(x_pack, self._w_pack, self._shift, tm,
                                  self.out_dtype)            # (N, Cp, Mp)
        out = out[:, :self.out_c, :M].reshape(N, self.out_c, Ho, Wo)
        return out                                           # already NCHW

    __call__ = forward

    # ---- pure-JAX reference ----------------------------------------------------
    def reference(self, x_nchw, match_kernel=False):
        scale = self.gamma / jnp.sqrt(self.running_var + self.eps)
        shift = self.beta - self.running_mean * scale
        x = jnp.transpose(x_nchw, (0, 2, 3, 1)).astype(jnp.float32)
        if match_kernel:   # mirror bf16 MXU inputs + folded scale
            w = (self.w_hwio * scale).astype(jnp.bfloat16).astype(jnp.float32)
            x = x.astype(jnp.bfloat16).astype(jnp.float32)
            post_scale = jnp.ones_like(scale)
        else:
            w = self.w_hwio
            post_scale = scale
        if self.fast_downsample:
            strides, padding = (4, 4), "VALID"
        else:
            strides, padding = (2, 2), ((1, 1), (1, 1))
        y = lax.conv_general_dilated(
            x, w, window_strides=strides, padding=padding,
            dimension_numbers=("NHWC", "HWIO", "NHWC"),
            precision=lax.Precision.HIGHEST)
        y = jnp.maximum(y * post_scale + shift, 0.0)
        return jnp.transpose(y, (0, 3, 1, 2))


if __name__ == "__main__":
    key = jax.random.PRNGKey(0)
    k_x, k_p1, k_p2 = jax.random.split(key, 3)

    N, Cin, H, W = 2, 4, 16, 16
    out_c = 32
    x = jax.random.normal(k_x, (N, Cin, H, W), jnp.float32)    # PyTorch NCHW

    # -- default stem: conv3x3/s2/p1 (bias=False) + BN + ReLU, bf16 output ----
    stem = PallasStem(Cin, out_c, fast_downsample=False, key=k_p1)
    y = jax.block_until_ready(jax.jit(stem.forward)(x))
    assert y.shape == (N, out_c, H // 2, W // 2), y.shape
    assert y.dtype == jnp.bfloat16, y.dtype
    y32 = y.astype(jnp.float32)
    ref_m = stem.reference(x, match_kernel=True)    # same-precision reference
    ref_f = stem.reference(x, match_kernel=False)   # full-f32 reference
    err_m = float(jnp.max(jnp.abs(y32 - ref_m)))
    err_f = float(jnp.max(jnp.abs(y32 - ref_f)))
    assert err_m < 7e-2, err_m
    assert err_f < 1.5e-1, err_f

    # -- same params, f32 output: tighter check of the conv/BN/ReLU math ------
    stem32 = PallasStem(Cin, out_c, fast_downsample=False, key=k_p1,
                        out_dtype=jnp.float32)
    y_f32 = jax.block_until_ready(jax.jit(stem32.forward)(x))
    err32 = float(jnp.max(jnp.abs(y_f32 - stem32.reference(x, match_kernel=True))))
    assert err32 < 5e-3, err32

    # -- fast_downsample stem: conv4x4/s4 (bias=False) + BN + ReLU ------------
    stem_fd = PallasStem(Cin, out_c, fast_downsample=True, key=k_p2)
    y2 = jax.block_until_ready(jax.jit(stem_fd.forward)(x))
    assert y2.shape == (N, out_c, H // 4, W // 4), y2.shape
    err2 = float(jnp.max(jnp.abs(
        y2.astype(jnp.float32) - stem_fd.reference(x, match_kernel=True))))
    assert err2 < 7e-2, err2

    print("KERNEL_OK")
</pallas_src>

<mosaic_0001>
module attributes {stable_mosaic.version = 11 : i64} {
  func.func @_stem_kernel(%arg0: i32, %arg1: i32, %arg2: memref<1x40x64xbf16, #tpu.memory_space<vmem>>, %arg3: memref<32x40xbf16, #tpu.memory_space<vmem>>, %arg4: memref<32x1xf32, #tpu.memory_space<vmem>>, %arg5: memref<1x32x64xbf16, #tpu.memory_space<vmem>>) attributes {dimension_semantics = [#tpu.dimension_semantics<parallel>, #tpu.dimension_semantics<parallel>], iteration_bounds = array<i64: 2, 1>, scalar_prefetch = 0 : i64, scratch_operands = 0 : i64, tpu.core_type = #tpu.core_type<tc>, window_params = [{transform_indices = @transform_0, window_bounds = array<i64: 1, 40, 64>}, {pipeline_mode = #tpu.pipeline_mode<synchronous>, transform_indices = @transform_1, window_bounds = array<i64: 32, 40>}, {pipeline_mode = #tpu.pipeline_mode<synchronous>, transform_indices = @transform_2, window_bounds = array<i64: 32, 1>}, {transform_indices = @transform_3, window_bounds = array<i64: 1, 32, 64>}]} {
    %c0 = arith.constant 0 : index
    %c0_0 = arith.constant 0 : index
    %0 = vector.load %arg3[%c0, %c0_0] : memref<32x40xbf16, #tpu.memory_space<vmem>>, vector<32x40xbf16>
    %c0_1 = arith.constant 0 : index
    %c0_2 = arith.constant 0 : index
    %c0_3 = arith.constant 0 : index
    %1 = vector.load %arg2[%c0_1, %c0_2, %c0_3] : memref<1x40x64xbf16, #tpu.memory_space<vmem>>, vector<1x40x64xbf16>
    %2 = vector.shape_cast %1 : vector<1x40x64xbf16> to vector<40x64xbf16>
    %cst = arith.constant dense<0.000000e+00> : vector<32x64xf32>
    %3 = tpu.matmul %0, %2, %cst {dimension_numbers = #tpu.dot_dimension_numbers<[1], [0], [0], [1], [0, 0, 1, 1], [], []>} : vector<32x40xbf16>, vector<40x64xbf16>, vector<32x64xf32> -> vector<32x64xf32>
    %c0_4 = arith.constant 0 : index
    %c0_5 = arith.constant 0 : index
    %4 = vector.load %arg4[%c0_4, %c0_5] : memref<32x1xf32, #tpu.memory_space<vmem>>, vector<32x1xf32>
    %5 = vector.broadcast %4 : vector<32x1xf32> to vector<32x64xf32>
    %6 = arith.addf %3, %5 : vector<32x64xf32>
    %cst_6 = arith.constant 0.000000e+00 : f32
    %7 = vector.broadcast %cst_6 : f32 to vector<32x64xf32>
    %8 = arith.maximumf %6, %7 : vector<32x64xf32>
    %9 = arith.truncf %8 : vector<32x64xf32> to vector<32x64xbf16>
    %c0_7 = arith.constant 0 : index
    %c0_8 = arith.constant 0 : index
    %c0_9 = arith.constant 0 : index
    %10 = vector.load %arg5[%c0_7, %c0_8, %c0_9] : memref<1x32x64xbf16, #tpu.memory_space<vmem>>, vector<1x32x64xbf16>
    %11 = vector.shape_cast %10 : vector<1x32x64xbf16> to vector<32x64xbf16>
    %12 = vector.shape_cast %9 : vector<32x64xbf16> to vector<1x32x64xbf16>
    tpu.vector_store %arg5[%c0_7, %c0_8, %c0_9], %12 {strides = array<i32>} : memref<1x32x64xbf16, #tpu.memory_space<vmem>>, vector<1x32x64xbf16>,
    return
  }
  func.func @transform_0(%arg0: i32, %arg1: i32) -> (i32, i32, i32) {
    %c0_i32 = arith.constant 0 : i32
    %c0_i32_0 = arith.constant 0 : i32
    return %arg0, %c0_i32, %arg1 : i32, i32, i32
  }
  func.func @transform_1(%arg0: i32, %arg1: i32) -> (i32, i32) {
    %c0_i32 = arith.constant 0 : i32
    %c0_i32_0 = arith.constant 0 : i32
    %c0_i32_1 = arith.constant 0 : i32
    return %c0_i32, %c0_i32_0 : i32, i32
  }
  func.func @transform_2(%arg0: i32, %arg1: i32) -> (i32, i32) {
    %c0_i32 = arith.constant 0 : i32
    %c0_i32_0 = arith.constant 0 : i32
    %c0_i32_1 = arith.constant 0 : i32
    return %c0_i32, %c0_i32_0 : i32, i32
  }
  func.func @transform_3(%arg0: i32, %arg1: i32) -> (i32, i32, i32) {
    %c0_i32 = arith.constant 0 : i32
    %c0_i32_0 = arith.constant 0 : i32
    return %arg0, %c0_i32, %arg1 : i32, i32, i32
  }
}

</mosaic_0001>

<llo_original>
// kernel: forward.1
$region0: #{forward.1}
  #allocation0 [shape = 'u32[]', space=smem, size = 0x4, offset = 0x4, fixed_abs, tag = 'smem constant byte address 0x4 - core index']
  #allocation1 [shape = 'u32[144,128]{1,0:T(1,128)}', space=vmem, size = 0x12000, scoped, tag = 'internal scratch']
  %s0 = inlined_call_operand.vmem [shape: bf16[2,40,64], index: 0, kind: input, shape index: {}]
  %s1 = inlined_call_operand.vmem [shape: bf16[32,40], index: 1, kind: input, shape index: {}]
  %s2 = inlined_call_operand.vmem [shape: f32[32,1], index: 2, kind: input, shape index: {}]
  %s3 = inlined_call_operand.vmem [shape: bf16[2,32,64], index: 3, kind: output, shape index: {}]
  %s4 = sld [smem:[#allocation0]]
  $region45: #{forward.1} parent=0
    _
  %s6 = ssub.s32 1, %s4
  %s7 = scalar_select 0, %s6, %s4
  loop: start=0, step=1, limit=4
  $region2: #{forward.1} parent=0 // loop_pre_header
    _
  $region3: #{forward.1} parent=0 // loop_header
    %s9 = sphi 0, %s13
    %p10 = scmp.ge.s32.totalorder %s9, 4
    %s16 = sphi 0, %s28
    %s17 = sphi 0, %s24
    %s18 = sphi 0, %s16
    %s19 = sphi 0, %s17
    %s20 = sphi 0, %s18
    %s21 = sphi 0, %s19
    %s33 = sphi 0, %s35
    %s36 = sphi 0, %s33
    %s37 = sphi 0, %s36
    %s53 = sphi 0, %s37
    %s57 = sphi 0, %s57
    %s59 = sphi 0, %s57
    %s60 = sphi 0, %s59
    %s74 = sphi 0, %s60
    %s78 = sphi 0, %s78
    %s80 = sphi 0, %s78
    %s81 = sphi 0, %s80
    %s95 = sphi 0, %s81
    %s103 = sphi 0, %s105
    %s106 = sphi 0, %s103
    %s107 = sphi 0, %s106
    %s123 = sphi 0, %s107
  $region4: #{forward.1} parent=0 // loop_header_branch
    %12 = sbr.rel (%p10) target = $region8
  $region5: #{forward.1} parent=0 // loop_body
    %s14 = ssub.s32 %s9, 1
    %s15 = ssub.s32 %s9, 2
    %s22 = sadd.s32 1, %s17
    %p23 = scmp.ge.s32.totalorder %s22, 1
    %s24 = scalar_select %p23, 0, %s22
    %s25 = sadd.s32 1, %s16
    %s26 = scalar_select %p23, %s25, %s16
    %p27 = scmp.ge.s32.totalorder %s26, 2
    %s28 = scalar_select %p27, 0, %s26
    %s29 = ssub.s32 %s16, %s28
    %s30 = ssub.s32 %s17, %s24
    %s31 = sor.u32 %s29, %s30
    %p32 = scmp.eq.s32.totalorder %s31, 0
    %s34 = sadd.s32 %s33, 1
    %s35 = scalar_select %p32, %s33, %s34
    %p38 = pneg %p32
    %p39 = scmp.eq.s32.totalorder %s9, 1
    %p40 = por %p38, %p39
    %p41 = scmp.ne.s32.totalorder %s33, %s36
    %p42 = scmp.eq.s32.totalorder %s9, 0
    %p43 = por %p41, %p42
    %p44 = scmp.ne.s32.totalorder %s33, %s36
    %p45 = scmp.eq.s32.totalorder %s14, 1
    %p46 = por %p44, %p45
    %p47 = scmp.ne.s32.totalorder %s36, %s37
    %p48 = scmp.eq.s32.totalorder %s14, 0
    %p49 = por %p47, %p48
    %p50 = scmp.ne.s32.totalorder %s36, %s37
    %p51 = scmp.eq.s32.totalorder %s15, 1
    %p52 = por %p50, %p51
    %p54 = scmp.ne.s32.totalorder %s37, %s53
    %p55 = scmp.eq.s32.totalorder %s15, 0
    %p56 = por %p54, %p55
    %s58 = sadd.s32 %s57, 1
    %p61 = scmp.eq.s32.totalorder %s9, 1
    %p62 = scmp.ne.s32.totalorder %s57, %s59
    %p63 = scmp.eq.s32.totalorder %s9, 0
    %p64 = por %p62, %p63
    %p65 = scmp.ne.s32.totalorder %s57, %s59
    %p66 = scmp.eq.s32.totalorder %s14, 1
    %p67 = por %p65, %p66
    %p68 = scmp.ne.s32.totalorder %s59, %s60
    %p69 = scmp.eq.s32.totalorder %s14, 0
    %p70 = por %p68, %p69
    %p71 = scmp.ne.s32.totalorder %s59, %s60
    %p72 = scmp.eq.s32.totalorder %s15, 1
    %p73 = por %p71, %p72
    %p75 = scmp.ne.s32.totalorder %s60, %s74
    %p76 = scmp.eq.s32.totalorder %s15, 0
    %p77 = por %p75, %p76
    %s79 = sadd.s32 %s78, 1
    %p82 = scmp.eq.s32.totalorder %s9, 1
    %p83 = scmp.ne.s32.totalorder %s78, %s80
    %p84 = scmp.eq.s32.totalorder %s9, 0
    %p85 = por %p83, %p84
    %p86 = scmp.ne.s32.totalorder %s78, %s80
    %p87 = scmp.eq.s32.totalorder %s14, 1
    %p88 = por %p86, %p87
    %p89 = scmp.ne.s32.totalorder %s80, %s81
    %p90 = scmp.eq.s32.totalorder %s14, 0
    %p91 = por %p89, %p90
    %p92 = scmp.ne.s32.totalorder %s80, %s81
    %p93 = scmp.eq.s32.totalorder %s15, 1
    %p94 = por %p92, %p93
    %p96 = scmp.ne.s32.totalorder %s81, %s95
    %p97 = scmp.eq.s32.totalorder %s15, 0
    %p98 = por %p96, %p97
    %s99 = ssub.s32 %s16, %s28
    %s100 = ssub.s32 %s17, %s24
    %s101 = sor.u32 %s99, %s100
    %p102 = scmp.eq.s32.totalorder %s101, 0
    %s104 = sadd.s32 %s103, 1
    %s105 = scalar_select %p102, %s103, %s104
    %p108 = pneg %p102
    %p109 = scmp.eq.s32.totalorder %s9, 1
    %p110 = por %p108, %p109
    %p111 = scmp.ne.s32.totalorder %s103, %s106
    %p112 = scmp.eq.s32.totalorder %s9, 0
    %p113 = por %p111, %p112
    %p114 = scmp.ne.s32.totalorder %s103, %s106
    %p115 = scmp.eq.s32.totalorder %s14, 1
    %p116 = por %p114, %p115
    %p117 = scmp.ne.s32.totalorder %s106, %s107
    %p118 = scmp.eq.s32.totalorder %s14, 0
    %p119 = por %p117, %p118
    %p120 = scmp.ne.s32.totalorder %s106, %s107
    %p121 = scmp.eq.s32.totalorder %s15, 1
    %p122 = por %p120, %p121
    %p124 = scmp.ne.s32.totalorder %s107, %s123
    %p125 = scmp.eq.s32.totalorder %s15, 0
    %p126 = por %p124, %p125
    %p127 = scmp.le.s32.totalorder 1, %s9
    %p128 = scmp.lt.s32.totalorder %s9, 3
    %p129 = pnand %p127, %p128
    %p130 = pneg %p129
    // Predicated region
    $region9: #{forward.1} parent=5 // pred_check
      _
    $region10: #{forward.1} parent=5 // pred_check_branch
      %132 = sbr.rel (%p129) target = $region12
    $region11: #{forward.1} parent=5 // pred_region
      %s133 = ssub.s32 %s9, 1
      // Predicated region
      $region13: #{forward.1} parent=11 // pred_check
        %p134 = pneg %p70
      $region14: #{forward.1} parent=11 // pred_check_branch
        %136 = sbr.rel (%p134) target = $region16
      $region15: #{forward.1} parent=11 // pred_region
        _
      $region16: #{forward.1} parent=11 // pred_fallthru
        _
      // Predicated region
      $region17: #{forward.1} parent=11 // pred_check
        %p137 = pneg %p91
      $region18: #{forward.1} parent=11 // pred_check_branch
        %139 = sbr.rel (%p137) target = $region20
      $region19: #{forward.1} parent=11 // pred_region
        _
      $region20: #{forward.1} parent=11 // pred_fallthru
        _
    $region12: #{forward.1} parent=5 // pred_fallthru
      _
    %p140 = scmp.lt.s32.totalorder %s9, 2
    // Predicated region
    $region21: #{forward.1} parent=5 // pred_check
      %p141 = pneg %p140
    $region22: #{forward.1} parent=5 // pred_check_branch
      %143 = sbr.rel (%p141) target = $region24
    $region23: #{forward.1} parent=5 // pred_region
      // Predicated region
      $region25: #{forward.1} parent=23 // pred_check
        %p144 = pneg %p43
      $region26: #{forward.1} parent=23 // pred_check_branch
        %146 = sbr.rel (%p144) target = $region28
      $region27: #{forward.1} parent=23 // pred_region
        %p147 = scmp.lt.s32.totalorder %s16, 1
        %s148 = scalar_select %p147, %s16, 1
        %p149 = scmp.lt.s32.totalorder %s17, 0
        %s150 = scalar_select %p149, %s17, 0
        %s151 = smul.addr %s148, 5
        %s152 = sadd.s32 %s150, %s151
        %s153 = smul.addr %s152, 4
        %s154 = scalar_lea.vmem %s0, %s153
      $region28: #{forward.1} parent=23 // pred_fallthru
        _
    $region24: #{forward.1} parent=5 // pred_fallthru
      _
    %p155 = scmp.le.s32.totalorder 1, %s9
    %p156 = scmp.lt.s32.totalorder %s9, 3
    %p157 = pnand %p155, %p156
    %p158 = pneg %p157
    // Predicated region
    $region29: #{forward.1} parent=5 // pred_check
      _
    $region30: #{forward.1} parent=5 // pred_check_branch
      %160 = sbr.rel (%p157) target = $region32
    $region31: #{forward.1} parent=5 // pred_region
      %s161 = ssub.s32 %s9, 1
      %p162 = scmp.lt.s32.totalorder %s18, 1
      %s163 = scalar_select %p162, %s18, 1
      %p164 = scmp.lt.s32.totalorder %s19, 0
      %s165 = scalar_select %p164, %s19, 0
      %s166 = smul.addr %s163, 5
      %s167 = sadd.s32 %s165, %s166
      %s168 = smul.addr %s167, 4
      %s169 = scalar_lea.vmem %s0, %s168
      %p170 = pneg %p49
      %p171 = pneg %p46
      %p172 = pneg %p70
      %p173 = pneg %p67
      %p174 = pneg %p91
      %p175 = pneg %p88
      %p176 = pneg %p119
      %p177 = pneg %p116
      %p178 = scmp.lt.s32.totalorder %s18, 1
      %s179 = scalar_select %p178, %s18, 1
      %p180 = scmp.lt.s32.totalorder %s19, 0
      %s181 = scalar_select %p180, %s19, 0
      %s182 = smul.addr %s179, 4
      %s183 = sadd.s32 %s181, %s182
      %s184 = smul.addr %s183, 4
      %s185 = scalar_lea.vmem %s3, %s184
      %p186 = scmp.lt.s32.totalorder %s18, 1
      %s187 = scalar_select %p186, %s18, 1
      %p188 = scmp.lt.s32.totalorder %s19, 0
      %s189 = scalar_select %p188, %s19, 0
      %s190 = smul.addr %s187, 5
      %s191 = sadd.s32 %s189, %s190
      %s192 = smul.addr %s191, 4
      %s193 = scalar_lea.vmem %s0, %s192
      %p194 = scmp.lt.s32.totalorder %s18, 1
      %s195 = scalar_select %p194, %s18, 1
      %p196 = scmp.lt.s32.totalorder %s19, 0
      %s197 = scalar_select %p196, %s19, 0
      %s198 = smul.addr %s195, 4
      %s199 = sadd.s32 %s197, %s198
      %s200 = smul.addr %s199, 4
      %s201 = scalar_lea.vmem %s3, %s200
      %v203 = vld [vmem:[%s1] sm:$0xf]
      %v204 = vld [vmem:[%s1 + $0x4] sm:$0xf]
      %v205 = vld [vmem:[%s1 + $0x8] sm:$0xf]
      %v206 = vld [vmem:[%s1 + $0xc] sm:$0xf]
      %v207 = vld [vmem:[%s193] sm:$0xf]
      %v208 = vld [vmem:[%s193 + $0x4] sm:$0xf]
      %v209 = vld [vmem:[%s193 + $0x8] sm:$0xf]
      %v210 = vld [vmem:[%s193 + $0xc] sm:$0xf]
      %v211 = vld [vmem:[%s193 + $0x10] sm:$0xf]
      %v212 = vld [vmem:[%s2] sm:$0xff]
      %v213 = vld [vmem:[%s2 + $0x8] sm:$0xff]
      %v214 = vld [vmem:[%s2 + $0x10] sm:$0xff]
      %v215 = vld [vmem:[%s2 + $0x18] sm:$0xff]
      %217 = vset.pattern.permute.xlu0 0
      %218 = vperm.xlu0 %217, %v212
      %v219 = vpop.permute.xlu0 %218
      %222 = vset.pattern.permute.xlu0 0
      %223 = vperm.xlu0 %222, %v213
      %v224 = vpop.permute.xlu0 %223
      %227 = vset.pattern.permute.xlu0 0
      %228 = vperm.xlu0 %227, %v214
      %v229 = vpop.permute.xlu0 %228
      %232 = vset.pattern.permute.xlu0 0
      %233 = vperm.xlu0 %232, %v215
      %v234 = vpop.permute.xlu0 %233
      %v240 = vunpack.c.l.b16 %v203
      %v241 = vunpack.c.l.b16 %v204
      %v242 = vunpack.c.l.b16 %v205
      %v243 = vunpack.c.l.b16 %v206
      %v244 = vpack.c.b16 %v241, %v240
      %v245 = vpack.c.b16 %v243, %v242
      %v251 = vunpack.c.l.b16 %v207
      %v252 = vunpack.c.l.b16 %v208
      %v253 = vunpack.c.l.b16 %v209
      %v254 = vunpack.c.l.b16 %v210
      %v255 = vunpack.c.l.b16 %v211
      %v256 = vpack.c.b16 %v252, %v251
      %v257 = vpack.c.b16 %v254, %v253
      %v258 = vpack.c.b16 %v255, %v255
      %vm261 = vcmask 326656
      %v263 = vsel %vm261, %v244, 0
      %v266 = vsel %vm261, %v245, 0
      %vm268 = vcmask 1043456
      %v270 = vsel %vm268, %v258, 0
      %272 = vmatprep.subr.bf16.mxu0 0
      %273 = vmatpush1.bf16.msra.mxu0 %v256
      %274 = vmatprep.subr.bf16.mxu0 0
      %275 = vmatpush1.bf16.msra.mxu0 %v257
      %276 = vmatprep.subr.bf16.mxu0 0
      %277 = vmatpush1.bf16.msra.mxu0 %v270
      %278 = vmatprep.subr.bf16.mxu0 0
      %279 = vmatpush1.bf16.msra.mxu0 0
      %280 = vmatprep.subr.bf16.mxu0 0
      %281 = vmatpush1.bf16.msra.mxu0 0
      %282 = vmatprep.subr.bf16.mxu0 0
      %283 = vmatpush1.bf16.msra.mxu0 0
      %284 = vmatprep.subr.bf16.mxu0 0
      %285 = vmatpush1.bf16.msra.mxu0 0
      %286 = vmatprep.subr.bf16.mxu0 0
      %287 = vmatpush1.bf16.msra.mxu0 0
      %288 = vmatprep.subr.bf16.mxu0 0
      %289 = vmatpush1.bf16.msra.mxu0 0
      %290 = vmatprep.subr.bf16.mxu0 0
      %291 = vmatpush1.bf16.msra.mxu0 0
      %292 = vmatprep.subr.bf16.mxu0 0
      %293 = vmatpush1.bf16.msra.mxu0 0
      %294 = vmatprep.subr.bf16.mxu0 0
      %295 = vmatpush1.bf16.msra.mxu0 0
      %296 = vmatprep.subr.bf16.mxu0 0
      %297 = vmatpush1.bf16.msra.mxu0 0
      %298 = vmatprep.subr.bf16.mxu0 0
      %299 = vmatpush1.bf16.msra.mxu0 0
      %300 = vmatprep.subr.bf16.mxu0 0
      %301 = vmatpush1.bf16.msra.mxu0 0
      %302 = vmatprep.subr.bf16.mxu0 0
      %303 = vmatpush1.bf16.msra.mxu0 0
      %304 = vmatprep.mubr.bf16.mxu0 0
      %305 = vmatmul.mubr.bf16.gmra.mrb[0].mxu0 %v263
      %v306 = vpop.f32.mrb[0].mxu0
      %v307 = vadd.f32 %v219, %v306
      %v308 = vpop.f32.mrb[0].mxu0
      %v309 = vpop.f32.mrb[0].mxu0
      %v310 = vadd.f32 %v224, %v309
      %v311 = vpop.f32.mrb[0].mxu0
      %312 = vmatprep.mubr.bf16.mxu0 0
      %313 = vmatmul.mubr.bf16.gmra.mrb[0].mxu0 %v266
      %v314 = vpop.f32.mrb[0].mxu0
      %v315 = vadd.f32 %v229, %v314
      %v316 = vpop.f32.mrb[0].mxu0
      %v317 = vpop.f32.mrb[0].mxu0
      %v318 = vadd.f32 %v234, %v317
      %v319 = vpop.f32.mrb[0].mxu0
      %320 = vdwg.mxu0
      %v321 = vmax.f32 %v307, 0.0
      %v322 = vmax.f32 %v310, 0.0
      %v323 = vmax.f32 %v315, 0.0
      %v324 = vmax.f32 %v318, 0.0
      %v325 = vpack.c.bf16 %v322, %v321
      %v326 = vpack.c.bf16 %v324, %v323
      %v329 = vunpack.c.l.b16 %v325
      %v330 = vunpack.c.h.b16 %v325
      %v331 = vunpack.c.l.b16 %v326
      %v332 = vunpack.c.h.b16 %v326
      %v333 = vpack.c.b16 %v329, %v329
      %v334 = vpack.c.b16 %v330, %v330
      %v335 = vpack.c.b16 %v331, %v331
      %v336 = vpack.c.b16 %v332, %v332
      %vm341 = vcmask 519168
      %342 = vst.msk [vmem:[%s201] sm:$0xf] %vm341, %v333
      %343 = vst.msk [vmem:[%s201 + $0x4] sm:$0xf] %vm341, %v334
      %344 = vst.msk [vmem:[%s201 + $0x8] sm:$0xf] %vm341, %v335
      %345 = vst.msk [vmem:[%s201 + $0xc] sm:$0xf] %vm341, %v336
      %p346 = scmp.lt.s32.totalorder %s18, 1
      %s347 = scalar_select %p346, %s18, 1
      %p348 = scmp.lt.s32.totalorder %s19, 0
      %s349 = scalar_select %p348, %s19, 0
      %s350 = smul.addr %s347, 4
      %s351 = sadd.s32 %s349, %s350
      %s352 = smul.addr %s351, 4
      %s353 = scalar_lea.vmem %s3, %s352
      // Predicated region
      $region33: #{forward.1} parent=31 // pred_check
        %p354 = pneg %p116
      $region34: #{forward.1} parent=31 // pred_check_branch
        %356 = sbr.rel (%p354) target = $region36
      $region35: #{forward.1} parent=31 // pred_region
        _
      $region36: #{forward.1} parent=31 // pred_fallthru
        _
    $region32: #{forward.1} parent=5 // pred_fallthru
      _
    %p357 = scmp.le.s32.totalorder 2, %s9
    // Predicated region
    $region37: #{forward.1} parent=5 // pred_check
      %p358 = pneg %p357
    $region38: #{forward.1} parent=5 // pred_check_branch
      %360 = sbr.rel (%p358) target = $region40
    $region39: #{forward.1} parent=5 // pred_region
      %s361 = ssub.s32 %s9, 2
      // Predicated region
      $region41: #{forward.1} parent=39 // pred_check
        %p362 = pneg %p122
      $region42: #{forward.1} parent=39 // pred_check_branch
        %364 = sbr.rel (%p362) target = $region44
      $region43: #{forward.1} parent=39 // pred_region
        %p365 = scmp.lt.s32.totalorder %s20, 1
        %s366 = scalar_select %p365, %s20, 1
        %p367 = scmp.lt.s32.totalorder %s21, 0
        %s368 = scalar_select %p367, %s21, 0
        %s369 = smul.addr %s366, 4
        %s370 = sadd.s32 %s368, %s369
        %s371 = smul.addr %s370, 4
        %s372 = scalar_lea.vmem %s3, %s371
      $region44: #{forward.1} parent=39 // pred_fallthru
        _
    $region40: #{forward.1} parent=5 // pred_fallthru
      _
  $region6: #{forward.1} parent=0 // loop_footer
    %s13 = sadd.s32 1, %s9
  $region7: #{forward.1} parent=0 // loop_footer_branch
    %8 = sbr.rel target = $region3
  $region8: #{forward.1} parent=0 // loop_exit
    _

</llo_original>
